<compile_context>
chip_gen: v5e
topology: v5e:2x2
jax: 0.10.0
libtpu: 0.0.40
codegen_flags: <defaults>
</compile_context>

<pallas_src>
import functools

import jax
import jax.numpy as jnp
from jax import lax
from jax.experimental import pallas as pl
from jax.experimental.pallas import tpu as pltpu

_LANE = 128


def _round_up(x, m):
    return ((x + m - 1) // m) * m


def _resident_spec(block_shape):
    """Constant-index (grid-invariant) BlockSpec. Single-buffered when the
    pipeline_mode API is available (default pipelining would double-buffer a
    block whose index never changes)."""
    index_map = lambda i: tuple(0 for _ in block_shape)
    buffered = getattr(pl, "Buffered", None)
    if buffered is not None:
        try:
            return pl.BlockSpec(block_shape, index_map, pipeline_mode=buffered(1))
        except TypeError:
            pass
    return pl.BlockSpec(block_shape, index_map)


# --------------------------------------------------------------------------
# Prologue kernel: K/V projection, computed once (fused ctx @ [wk|wv]).
# --------------------------------------------------------------------------
def _kv_projection_kernel(ctx_ref, wkv_ref, bkv_ref, k_ref, v_ref):
    kv = (jnp.dot(ctx_ref[...], wkv_ref[...],
                  preferred_element_type=jnp.float32) + bkv_ref[...])
    hp = k_ref.shape[-1]
    k_ref[...] = kv[:, :hp].astype(k_ref.dtype)   # lane-aligned slices of the
    v_ref[...] = kv[:, hp:].astype(v_ref.dtype)   # fused [ts, 2Hp] result


# --------------------------------------------------------------------------
# Main kernel: per-entity-tile attention against the cached K/V.
# --------------------------------------------------------------------------
def _entity_attention_kernel(ent_ref, k_ref, v_ref, wq_ref, bq_ref, bias_ref,
                             out_ref, *attn_refs, approx_recip=True):
    ent = ent_ref[...]                                    # bf16 [tn, Hp]

    # wq/bq are pre-scaled by 1/sqrt(H) on the host.
    q = (jnp.dot(ent, wq_ref[...], preferred_element_type=jnp.float32)
         + bq_ref[...]).astype(jnp.bfloat16)

    # scores[n, s] = sum_h q[n, h] * k[s, h]  — contract last dims directly,
    # no explicit K transpose (avoids XLU work / a materialized K copy).
    scores = lax.dot_general(q, k_ref[...], (((1,), (1,)), ((), ())),
                             preferred_element_type=jnp.float32)
    scores = scores + bias_ref[...]          # additive mask bias (0 / -1e9)

    # Numerically-stable softmax in f32 (v5e has no bf16 VPU/EUP).
    scores = scores - jnp.max(scores, axis=-1, keepdims=True)
    e = jnp.exp(scores)
    denom = jnp.sum(e, axis=-1, keepdims=True)
    if approx_recip:
        attn = e * pl.reciprocal(denom, approx=True)   # EUP slot, ~2^-12 rel err
    else:
        attn = e / denom                                # exact normalization

    # output = attn @ v  (bf16 MXU operands, f32 accumulation).
    out_ref[...] = jnp.dot(attn.astype(jnp.bfloat16), v_ref[...],
                           preferred_element_type=jnp.float32
                           ).astype(out_ref.dtype)
    if attn_refs:
        attn_refs[0][...] = attn.astype(attn_refs[0].dtype)


# --------------------------------------------------------------------------
# Wrapper
# --------------------------------------------------------------------------
def context_aware_attention(entity_embeddings, context_embeddings, kparams,
                            attention_mask=None, *, return_attn=True,
                            tile_n=256, tile_s=256,
                            out_dtype=jnp.float32, attn_dtype=jnp.float32,
                            approx_recip=True,
                            vmem_limit_bytes=48 * 1024 * 1024):
    """entity_embeddings: [N, H]; context_embeddings: [S, H];
    kparams: output of prepare_params (padded/fused bf16 weights);
    attention_mask: [S] (1 = keep, 0 = mask) or None.
    Returns (output [N, H] out_dtype, attn_weights [N, S] attn_dtype or None)."""
    n, h = entity_embeddings.shape
    s, _ = context_embeddings.shape
    assert h == kparams["hidden"], "kparams prepared for a different hidden size"
    hp = kparams["hidden_padded"]
    sp = _round_up(s, _LANE)

    # --- lane-dense padding (H, S -> multiples of 128) ----------------------
    ent = entity_embeddings.astype(jnp.bfloat16)
    ctx = context_embeddings.astype(jnp.bfloat16)
    if hp != h:
        ent = jnp.pad(ent, ((0, 0), (0, hp - h)))
        ctx = jnp.pad(ctx, ((0, 0), (0, hp - h)))
    if sp != s:
        ctx = jnp.pad(ctx, ((0, sp - s), (0, 0)))

    # Additive mask bias over the padded context axis; padded positions are
    # always masked so they get exactly-zero attention weight.
    if attention_mask is None:
        keep = jnp.ones((s,), jnp.float32)
    else:
        keep = (attention_mask.reshape(s) != 0).astype(jnp.float32)
    keep = jnp.pad(keep, (0, sp - s))
    bias = jnp.where(keep == 0, jnp.float32(-1e9),
                     jnp.float32(0.0)).reshape(1, sp)

    cparams = pltpu.CompilerParams(
        dimension_semantics=("parallel",),      # v7x: shard tiles over 2 TCs
        vmem_limit_bytes=vmem_limit_bytes)      # 48 MiB default is v7x-safe

    # --- prologue: K/V projection, computed once ---------------------------
    ts = sp if sp <= tile_s else tile_s
    k_pad, v_pad = pl.pallas_call(
        _kv_projection_kernel,
        out_shape=(jax.ShapeDtypeStruct((sp, hp), jnp.bfloat16),
                   jax.ShapeDtypeStruct((sp, hp), jnp.bfloat16)),
        grid=(pl.cdiv(sp, ts),),
        in_specs=[pl.BlockSpec((ts, hp), lambda i: (i, 0)),   # ctx tile
                  _resident_spec((hp, 2 * hp)),               # wkv (fused, bf16)
                  _resident_spec((1, 2 * hp))],               # bkv (f32)
        out_specs=(pl.BlockSpec((ts, hp), lambda i: (i, 0)),
                   pl.BlockSpec((ts, hp), lambda i: (i, 0))),
        compiler_params=cparams,
    )(ctx, kparams["wkv"], kparams["bkv"])

    # --- main: per-entity-tile attention ------------------------------------
    tn = n if n <= tile_n else tile_n
    out_shape = [jax.ShapeDtypeStruct((n, hp), out_dtype)]
    out_specs = [pl.BlockSpec((tn, hp), lambda i: (i, 0))]
    if return_attn:
        out_shape.append(jax.ShapeDtypeStruct((n, sp), attn_dtype))
        out_specs.append(pl.BlockSpec((tn, sp), lambda i: (i, 0)))

    kernel = functools.partial(_entity_attention_kernel,
                               approx_recip=approx_recip)
    outs = pl.pallas_call(
        kernel,
        out_shape=tuple(out_shape),
        grid=(pl.cdiv(n, tn),),
        in_specs=[pl.BlockSpec((tn, hp), lambda i: (i, 0)),   # entity tile (pipelined)
                  _resident_spec((sp, hp)),                   # K (VMEM-resident)
                  _resident_spec((sp, hp)),                   # V (VMEM-resident)
                  _resident_spec((hp, hp)),                   # wq (pre-scaled bf16)
                  _resident_spec((1, hp)),                    # bq (pre-scaled f32)
                  _resident_spec((1, sp))],                   # additive mask bias
        out_specs=tuple(out_specs),
        compiler_params=cparams,
    )(ent, k_pad, v_pad, kparams["wq"], kparams["bq"], bias)

    if not isinstance(outs, (tuple, list)):
        outs = (outs,)
    out = outs[0][:, :h]                        # strip H padding
    if return_attn:
        return out, outs[1][:, :s]              # strip S padding
    return out, None


# --------------------------------------------------------------------------
# Parameters
# --------------------------------------------------------------------------
def init_params(key, hidden):
    """Deterministic synthetic parameters for the three nn.Linear layers
    (f32, weights stored already transposed: [hidden_in, hidden_out])."""
    ks = jax.random.split(key, 6)
    lim = 1.0 / (hidden ** 0.5)  # nn.Linear's uniform(-1/sqrt(in), 1/sqrt(in))
    u = lambda k, shape: jax.random.uniform(k, shape, jnp.float32, -lim, lim)
    return {
        "wq": u(ks[0], (hidden, hidden)), "bq": u(ks[1], (1, hidden)),
        "wk": u(ks[2], (hidden, hidden)), "bk": u(ks[3], (1, hidden)),
        "wv": u(ks[4], (hidden, hidden)), "bv": u(ks[5], (1, hidden)),
    }


def prepare_params(params, hidden):
    """One-time host-side transform: fold 1/sqrt(H) into the query projection,
    pad all weights/biases to lane multiples of 128, fuse wk|wv and bk|bv,
    and cast MXU weight operands to bf16 (biases stay f32)."""
    hp = _round_up(hidden, _LANE)
    scale = jnp.float32(1.0 / (hidden ** 0.5))
    pad_w = lambda w: jnp.pad(w, ((0, hp - hidden), (0, hp - hidden)))
    pad_b = lambda b: jnp.pad(b, ((0, 0), (0, hp - hidden)))
    wkv = jnp.concatenate([pad_w(params["wk"]), pad_w(params["wv"])], axis=1)
    bkv = jnp.concatenate([pad_b(params["bk"]), pad_b(params["bv"])], axis=1)
    return {
        "wq": pad_w(params["wq"] * scale).astype(jnp.bfloat16),
        "bq": pad_b(params["bq"] * scale).astype(jnp.float32),
        "wkv": wkv.astype(jnp.bfloat16),
        "bkv": bkv.astype(jnp.float32),
        "hidden": hidden,
        "hidden_padded": hp,
    }


def _reference(entity, context, params, mask):
    """Pure-JAX f32 reference matching the PyTorch module."""
    q = entity @ params["wq"] + params["bq"]
    k = context @ params["wk"] + params["bk"]
    v = context @ params["wv"] + params["bv"]
    scores = (q @ k.T) / (q.shape[-1] ** 0.5)
    scores = jnp.where(mask[None, :] == 0, -1e9, scores)
    attn = jax.nn.softmax(scores, axis=-1)
    return attn @ v, attn


if __name__ == "__main__":
    num_entities, seq_len, hidden = 8, 16, 32
    key = jax.random.PRNGKey(0)
    k_ent, k_ctx, k_param, k_ent2 = jax.random.split(key, 4)

    entity_embeddings = jax.random.normal(k_ent, (num_entities, hidden), jnp.float32)
    context_embeddings = jax.random.normal(k_ctx, (seq_len, hidden), jnp.float32)
    # Mask out the last 4 context positions.
    attention_mask = jnp.concatenate(
        [jnp.ones((seq_len - 4,), jnp.int32), jnp.zeros((4,), jnp.int32)])

    params = init_params(k_param, hidden)
    kparams = prepare_params(params, hidden)   # scale fold + fuse + pad + bf16

    out, attn = context_aware_attention(
        entity_embeddings, context_embeddings, kparams, attention_mask)
    out = jax.block_until_ready(out)
    attn = jax.block_until_ready(attn)

    ref_out, ref_attn = _reference(entity_embeddings, context_embeddings,
                                   params, attention_mask)
    assert out.shape == (num_entities, hidden)
    assert attn.shape == (num_entities, seq_len)
    # bf16 MXU operands -> loosened tolerances (softmax/accumulation stay f32).
    assert jnp.allclose(out, ref_out, atol=3e-2, rtol=3e-2)
    assert jnp.allclose(attn, ref_attn, atol=3e-2, rtol=3e-2)
    # Masked positions get (numerically) zero attention.
    assert jnp.all(attn[:, -4:] < 1e-6)

    # Output-only path (skips the attn-weights writeback DMA) also works.
    out_only, none_attn = context_aware_attention(
        entity_embeddings, context_embeddings, kparams, attention_mask,
        return_attn=False)
    out_only = jax.block_until_ready(out_only)
    assert none_attn is None
    assert jnp.allclose(out_only, ref_out, atol=3e-2, rtol=3e-2)

    # Edge-tile coverage: N not a multiple of tile_n (exercises block clipping).
    n2 = 24
    ent2 = jax.random.normal(k_ent2, (n2, hidden), jnp.float32)
    out2, attn2 = context_aware_attention(
        ent2, context_embeddings, kparams, attention_mask, tile_n=16)
    out2 = jax.block_until_ready(out2)
    attn2 = jax.block_until_ready(attn2)
    ref_out2, ref_attn2 = _reference(ent2, context_embeddings, params,
                                     attention_mask)
    assert out2.shape == (n2, hidden) and attn2.shape == (n2, seq_len)
    assert jnp.allclose(out2, ref_out2, atol=3e-2, rtol=3e-2)
    assert jnp.allclose(attn2, ref_attn2, atol=3e-2, rtol=3e-2)

    print("KERNEL_OK")
</pallas_src>

<mosaic_0001>
module attributes {stable_mosaic.version = 11 : i64} {
  func.func @_kv_projection_kernel(%arg0: i32, %arg1: memref<128x128xbf16, #tpu.memory_space<vmem>>, %arg2: memref<128x256xbf16, #tpu.memory_space<vmem>>, %arg3: memref<1x256xf32, #tpu.memory_space<vmem>>, %arg4: memref<128x128xbf16, #tpu.memory_space<vmem>>, %arg5: memref<128x128xbf16, #tpu.memory_space<vmem>>) attributes {dimension_semantics = [#tpu.dimension_semantics<parallel>], iteration_bounds = array<i64: 1>, scalar_prefetch = 0 : i64, scratch_operands = 0 : i64, tpu.core_type = #tpu.core_type<tc>, window_params = [{transform_indices = @transform_0, window_bounds = array<i64: 128, 128>}, {pipeline_mode = #tpu.pipeline_mode<synchronous>, transform_indices = @transform_1, window_bounds = array<i64: 128, 256>}, {pipeline_mode = #tpu.pipeline_mode<synchronous>, transform_indices = @transform_2, window_bounds = array<i64: 1, 256>}, {transform_indices = @transform_3, window_bounds = array<i64: 128, 128>}, {transform_indices = @transform_4, window_bounds = array<i64: 128, 128>}]} {
    %c0 = arith.constant 0 : index
    %c0_0 = arith.constant 0 : index
    %0 = vector.load %arg1[%c0, %c0_0] : memref<128x128xbf16, #tpu.memory_space<vmem>>, vector<128x128xbf16>
    %c0_1 = arith.constant 0 : index
    %c0_2 = arith.constant 0 : index
    %1 = vector.load %arg2[%c0_1, %c0_2] : memref<128x256xbf16, #tpu.memory_space<vmem>>, vector<128x256xbf16>
    %cst = arith.constant dense<0.000000e+00> : vector<128x256xf32>
    %2 = tpu.matmul %0, %1, %cst {dimension_numbers = #tpu.dot_dimension_numbers<[1], [0], [0], [1], [0, 0, 1, 1], [], []>} : vector<128x128xbf16>, vector<128x256xbf16>, vector<128x256xf32> -> vector<128x256xf32>
    %c0_3 = arith.constant 0 : index
    %c0_4 = arith.constant 0 : index
    %3 = vector.load %arg3[%c0_3, %c0_4] : memref<1x256xf32, #tpu.memory_space<vmem>>, vector<1x256xf32>
    %4 = vector.broadcast %3 : vector<1x256xf32> to vector<128x256xf32>
    %5 = arith.addf %2, %4 : vector<128x256xf32>
    %6 = vector.extract_strided_slice %5 {offsets = [0, 0], sizes = [128, 128], strides = [1, 1]} : vector<128x256xf32> to vector<128x128xf32>
    %7 = arith.truncf %6 : vector<128x128xf32> to vector<128x128xbf16>
    %c0_5 = arith.constant 0 : index
    %c0_6 = arith.constant 0 : index
    %8 = vector.load %arg4[%c0_5, %c0_6] : memref<128x128xbf16, #tpu.memory_space<vmem>>, vector<128x128xbf16>
    tpu.vector_store %arg4[%c0_5, %c0_6], %7 {strides = array<i32>} : memref<128x128xbf16, #tpu.memory_space<vmem>>, vector<128x128xbf16>,
    %9 = vector.extract_strided_slice %5 {offsets = [0, 128], sizes = [128, 128], strides = [1, 1]} : vector<128x256xf32> to vector<128x128xf32>
    %10 = arith.truncf %9 : vector<128x128xf32> to vector<128x128xbf16>
    %c0_7 = arith.constant 0 : index
    %c0_8 = arith.constant 0 : index
    %11 = vector.load %arg5[%c0_7, %c0_8] : memref<128x128xbf16, #tpu.memory_space<vmem>>, vector<128x128xbf16>
    tpu.vector_store %arg5[%c0_7, %c0_8], %10 {strides = array<i32>} : memref<128x128xbf16, #tpu.memory_space<vmem>>, vector<128x128xbf16>,
    return
  }
  func.func @transform_0(%arg0: i32) -> (i32, i32) {
    %c0_i32 = arith.constant 0 : i32
    %c0_i32_0 = arith.constant 0 : i32
    return %arg0, %c0_i32 : i32, i32
  }
  func.func @transform_1(%arg0: i32) -> (i32, i32) {
    %c0_i32 = arith.constant 0 : i32
    %c0_i32_0 = arith.constant 0 : i32
    %c0_i32_1 = arith.constant 0 : i32
    return %c0_i32, %c0_i32_0 : i32, i32
  }
  func.func @transform_2(%arg0: i32) -> (i32, i32) {
    %c0_i32 = arith.constant 0 : i32
    %c0_i32_0 = arith.constant 0 : i32
    %c0_i32_1 = arith.constant 0 : i32
    return %c0_i32, %c0_i32_0 : i32, i32
  }
  func.func @transform_3(%arg0: i32) -> (i32, i32) {
    %c0_i32 = arith.constant 0 : i32
    %c0_i32_0 = arith.constant 0 : i32
    return %arg0, %c0_i32 : i32, i32
  }
  func.func @transform_4(%arg0: i32) -> (i32, i32) {
    %c0_i32 = arith.constant 0 : i32
    %c0_i32_0 = arith.constant 0 : i32
    return %arg0, %c0_i32 : i32, i32
  }
}

</mosaic_0001>

<llo_original>
// kernel: tpu_custom_call.1
$region0: #{tpu_custom_call.1}
  #allocation0 [shape = 'u32[]', space=smem, size = 0x4, offset = 0x4, fixed_abs, tag = 'smem constant byte address 0x4 - core index']
  #allocation1 [shape = 'u32[72,128]{1,0:T(1,128)}', space=vmem, size = 0x9000, scoped, tag = 'internal scratch']
  %s0 = inlined_call_operand.hbm [shape: bf16[128,128], index: 0, kind: input, shape index: {}]
  %s1 = inlined_call_operand.hbm [shape: bf16[128,256], index: 1, kind: input, shape index: {}]
  %s2 = inlined_call_operand.hbm [shape: f32[1,256], index: 2, kind: input, shape index: {}]
  %s3 = inlined_call_operand.hbm [shape: bf16[128,128], index: 3, kind: output, shape index: {0}]
  %s4 = inlined_call_operand.hbm [shape: bf16[128,128], index: 4, kind: output, shape index: {1}]
  %5 = xla_tuple %s3, %s4
  %s6 = sld [smem:[#allocation0]]
  $region42: #{tpu_custom_call.1} parent=0
    _
  %s8 = ssub.s32 1, %s6
  %s9 = scalar_select 0, %s8, %s6
  $region1: #{tpu_custom_call.1} parent=0
    #allocation2 [shape = 'u8[32768]{0}', space=vmem, size = 0x8000, scoped, tag = 'input window, operand 0, single buffered']
    #allocation3 [shape = 's32[1]{0}', space=sflag, size = 0x4, scoped, tag = 'scoped memory for tpu_custom_call.1']
    #allocation4 [shape = 's32[1]{0}', space=sflag, size = 0x4, scoped, tag = 'scoped memory for tpu_custom_call.1']
    #allocation5 [shape = 'u8[65536]{0}', space=vmem, size = 0x10000, scoped, tag = 'input window, operand 1, single buffered']
    #allocation6 [shape = 's32[1]{0}', space=sflag, size = 0x4, scoped, tag = 'scoped memory for tpu_custom_call.1']
    #allocation7 [shape = 'u8[1024]{0}', space=vmem, size = 0x400, scoped, tag = 'input window, operand 2, single buffered']
    #allocation8 [shape = 'u8[32768]{0}', space=vmem, size = 0x8000, scoped, tag = 'output window, operand 0, single buffered']
    #allocation9 [shape = 'u8[32768]{0}', space=vmem, size = 0x8000, scoped, tag = 'output window, operand 1, single buffered']
    #allocation10 [shape = 's32[1]{0}', space=sflag, size = 0x4, scoped, tag = 'scoped memory for tpu_custom_call.1']
    %10 = vsyncpa [#allocation3], 0
    %11 = vsyncpa [#allocation6], 0
    %12 = vsyncpa [#allocation4], 0
    %13 = vsyncpa [#allocation10], 0
    // Predicated region
    $region2: #{tpu_custom_call.1} parent=1 // pred_check
      _
    $region3: #{tpu_custom_call.1} parent=1 // pred_check_branch
      %15 = sbr.rel (0) target = $region5
    $region4: #{tpu_custom_call.1} parent=1 // pred_region
      %17 = vsyncadd [#allocation3], 0
      %s18 = sshll.u32 %s0, 4
      %s19 = int_to_ptr.hbm [resolvable:$true] %s18
      %s20 = sshll.u32 [#allocation2], 4
      %s21 = int_to_ptr.vmem [resolvable:$true] %s20
      %26 = dma.hbm_to_vmem [thread:$0]  %s19, 1024, %s21, [#allocation3], 64, 64, 4
    $region5: #{tpu_custom_call.1} parent=1 // pred_fallthru
      _
    // Predicated region
    $region6: #{tpu_custom_call.1} parent=1 // pred_check
      _
    $region7: #{tpu_custom_call.1} parent=1 // pred_check_branch
      %28 = sbr.rel (0) target = $region9
    $region8: #{tpu_custom_call.1} parent=1 // pred_region
      %30 = vsyncadd [#allocation6], 0
      %s31 = sshll.u32 %s1, 4
      %s32 = int_to_ptr.hbm [resolvable:$true] %s31
      %s33 = sshll.u32 [#allocation5], 4
      %s34 = int_to_ptr.vmem [resolvable:$true] %s33
      %39 = dma.hbm_to_vmem [thread:$0]  %s32, 2048, %s34, [#allocation6], 128, 128, 8
    $region9: #{tpu_custom_call.1} parent=1 // pred_fallthru
      _
    // Predicated region
    $region10: #{tpu_custom_call.1} parent=1 // pred_check
      _
    $region11: #{tpu_custom_call.1} parent=1 // pred_check_branch
      %41 = sbr.rel (0) target = $region13
    $region12: #{tpu_custom_call.1} parent=1 // pred_region
      %43 = vsyncadd [#allocation6], 0
      %s45 = sshll.u32 %s2, 4
      %s46 = int_to_ptr.hbm [resolvable:$true] %s45
      %s47 = sshll.u32 [#allocation7], 4
      %s48 = int_to_ptr.vmem [resolvable:$true] %s47
      %50 = dma.hbm_to_vmem [thread:$0]  %s46, 32, %s48, [#allocation6]
    $region13: #{tpu_custom_call.1} parent=1 // pred_fallthru
      _
    // Predicated region
    $region14: #{tpu_custom_call.1} parent=1 // pred_check
      _
    $region15: #{tpu_custom_call.1} parent=1 // pred_check_branch
      %52 = sbr.rel (0) target = $region17
    $region16: #{tpu_custom_call.1} parent=1 // pred_region
      %54 = dma.done [#allocation3], 1024
    $region17: #{tpu_custom_call.1} parent=1 // pred_fallthru
      _
    // Predicated region
    $region18: #{tpu_custom_call.1} parent=1 // pred_check
      _
    $region19: #{tpu_custom_call.1} parent=1 // pred_check_branch
      %56 = sbr.rel (0) target = $region21
    $region20: #{tpu_custom_call.1} parent=1 // pred_region
      %58 = dma.done [#allocation6], 2048
    $region21: #{tpu_custom_call.1} parent=1 // pred_fallthru
      _
    // Predicated region
    $region22: #{tpu_custom_call.1} parent=1 // pred_check
      _
    $region23: #{tpu_custom_call.1} parent=1 // pred_check_branch
      %60 = sbr.rel (0) target = $region25
    $region24: #{tpu_custom_call.1} parent=1 // pred_region
      %62 = dma.done [#allocation6], 32
    $region25: #{tpu_custom_call.1} parent=1 // pred_fallthru
      _
    %v63 = vld [vmem:[#allocation2] sm:$0xf]
    %v64 = vld [vmem:[#allocation2 + $0x4] sm:$0xf]
    %v65 = vld [vmem:[#allocation2 + $0x8] sm:$0xf]
    %v66 = vld [vmem:[#allocation2 + $0xc] sm:$0xf]
    %v67 = vld [vmem:[#allocation2 + $0x10] sm:$0xf]
    %v68 = vld [vmem:[#allocation2 + $0x14] sm:$0xf]
    %v69 = vld [vmem:[#allocation2 + $0x18] sm:$0xf]
    %v70 = vld [vmem:[#allocation2 + $0x1c] sm:$0xf]
    %v71 = vld [vmem:[#allocation2 + $0x20] sm:$0xf]
    %v72 = vld [vmem:[#allocation2 + $0x24] sm:$0xf]
    %v73 = vld [vmem:[#allocation2 + $0x28] sm:$0xf]
    %v74 = vld [vmem:[#allocation2 + $0x2c] sm:$0xf]
    %v75 = vld [vmem:[#allocation2 + $0x30] sm:$0xf]
    %v76 = vld [vmem:[#allocation2 + $0x34] sm:$0xf]
    %v77 = vld [vmem:[#allocation2 + $0x38] sm:$0xf]
    %v78 = vld [vmem:[#allocation2 + $0x3c] sm:$0xf]
    %v79 = vld [vmem:[#allocation5] sm:$0xff]
    %v80 = vld [vmem:[#allocation5 + $0x8] sm:$0xff]
    %v81 = vld [vmem:[#allocation5 + $0x10] sm:$0xff]
    %v82 = vld [vmem:[#allocation5 + $0x18] sm:$0xff]
    %v83 = vld [vmem:[#allocation5 + $0x20] sm:$0xff]
    %v84 = vld [vmem:[#allocation5 + $0x28] sm:$0xff]
    %v85 = vld [vmem:[#allocation5 + $0x30] sm:$0xff]
    %v86 = vld [vmem:[#allocation5 + $0x38] sm:$0xff]
    %v87 = vld [vmem:[#allocation5 + $0x40] sm:$0xff]
    %v88 = vld [vmem:[#allocation5 + $0x48] sm:$0xff]
    %v89 = vld [vmem:[#allocation5 + $0x50] sm:$0xff]
    %v90 = vld [vmem:[#allocation5 + $0x58] sm:$0xff]
    %v91 = vld [vmem:[#allocation5 + $0x60] sm:$0xff]
    %v92 = vld [vmem:[#allocation5 + $0x68] sm:$0xff]
    %v93 = vld [vmem:[#allocation5 + $0x70] sm:$0xff]
    %v94 = vld [vmem:[#allocation5 + $0x78] sm:$0xff]
    %v95 = vld [vmem:[#allocation7] sm:$0x3]
    %v97 = vperm.slane %v95, 0
    %v98 = vperm.slane %v95, 1
    %v117 = vunpack.c.l.b16 %v63
    %v118 = vunpack.c.l.b16 %v64
    %v119 = vunpack.c.l.b16 %v65
    %v120 = vunpack.c.l.b16 %v66
    %v121 = vunpack.c.l.b16 %v67
    %v122 = vunpack.c.l.b16 %v68
    %v123 = vunpack.c.l.b16 %v69
    %v124 = vunpack.c.l.b16 %v70
    %v125 = vunpack.c.l.b16 %v71
    %v126 = vunpack.c.l.b16 %v72
    %v127 = vunpack.c.l.b16 %v73
    %v128 = vunpack.c.l.b16 %v74
    %v129 = vunpack.c.l.b16 %v75
    %v130 = vunpack.c.l.b16 %v76
    %v131 = vunpack.c.l.b16 %v77
    %v132 = vunpack.c.l.b16 %v78
    %v133 = vpack.c.b16 %v118, %v117
    %v134 = vpack.c.b16 %v120, %v119
    %v135 = vpack.c.b16 %v122, %v121
    %v136 = vpack.c.b16 %v124, %v123
    %v137 = vpack.c.b16 %v126, %v125
    %v138 = vpack.c.b16 %v128, %v127
    %v139 = vpack.c.b16 %v130, %v129
    %v140 = vpack.c.b16 %v132, %v131
    %v165 = vunpack.c.l.b16 %v79
    %v166 = vunpack.c.h.b16 %v79
    %v167 = vunpack.c.l.b16 %v80
    %v168 = vunpack.c.h.b16 %v80
    %v169 = vunpack.c.l.b16 %v81
    %v170 = vunpack.c.h.b16 %v81
    %v171 = vunpack.c.l.b16 %v82
    %v172 = vunpack.c.h.b16 %v82
    %v173 = vunpack.c.l.b16 %v83
    %v174 = vunpack.c.h.b16 %v83
    %v175 = vunpack.c.l.b16 %v84
    %v176 = vunpack.c.h.b16 %v84
    %v177 = vunpack.c.l.b16 %v85
    %v178 = vunpack.c.h.b16 %v85
    %v179 = vunpack.c.l.b16 %v86
    %v180 = vunpack.c.h.b16 %v86
    %v181 = vunpack.c.l.b16 %v87
    %v182 = vunpack.c.h.b16 %v87
    %v183 = vunpack.c.l.b16 %v88
    %v184 = vunpack.c.h.b16 %v88
    %v185 = vunpack.c.l.b16 %v89
    %v186 = vunpack.c.h.b16 %v89
    %v187 = vunpack.c.l.b16 %v90
    %v188 = vunpack.c.h.b16 %v90
    %v189 = vunpack.c.l.b16 %v91
    %v190 = vunpack.c.h.b16 %v91
    %v191 = vunpack.c.l.b16 %v92
    %v192 = vunpack.c.h.b16 %v92
    %v193 = vunpack.c.l.b16 %v93
    %v194 = vunpack.c.h.b16 %v93
    %v195 = vunpack.c.l.b16 %v94
    %v196 = vunpack.c.h.b16 %v94
    %v197 = vpack.c.b16 %v167, %v165
    %v198 = vpack.c.b16 %v168, %v166
    %v199 = vpack.c.b16 %v171, %v169
    %v200 = vpack.c.b16 %v172, %v170
    %v201 = vpack.c.b16 %v175, %v173
    %v202 = vpack.c.b16 %v176, %v174
    %v203 = vpack.c.b16 %v179, %v177
    %v204 = vpack.c.b16 %v180, %v178
    %v205 = vpack.c.b16 %v183, %v181
    %v206 = vpack.c.b16 %v184, %v182
    %v207 = vpack.c.b16 %v187, %v185
    %v208 = vpack.c.b16 %v188, %v186
    %v209 = vpack.c.b16 %v191, %v189
    %v210 = vpack.c.b16 %v192, %v190
    %v211 = vpack.c.b16 %v195, %v193
    %v212 = vpack.c.b16 %v196, %v194
    %229 = vmatpush.bf16.msra.mxu0 %v211
    %230 = vmatpush.bf16.msra.mxu0 %v209
    %231 = vmatpush.bf16.msra.mxu0 %v207
    %232 = vmatpush.bf16.msra.mxu0 %v205
    %233 = vmatpush.bf16.msra.mxu0 %v203
    %234 = vmatpush.bf16.msra.mxu0 %v201
    %235 = vmatpush.bf16.msra.mxu0 %v199
    %236 = vmatpush.bf16.msra.mxu0 %v197
    %237 = vmatmul.bf16.gmra.mxu0 %v133
    %v238 = vpop.f32.mrf.mxu0
    %v239 = vadd.f32 %v97, %v238
    %v240 = vpop.f32.mrf.mxu0
    %v241 = vadd.f32 %v97, %v240
    %242 = vmatmul.bf16.gmra.mxu0 %v134
    %v243 = vpop.f32.mrf.mxu0
    %v244 = vadd.f32 %v97, %v243
    %v245 = vpop.f32.mrf.mxu0
    %v246 = vadd.f32 %v97, %v245
    %247 = vmatmul.bf16.gmra.mxu0 %v135
    %v248 = vpop.f32.mrf.mxu0
    %v249 = vadd.f32 %v97, %v248
    %v250 = vpop.f32.mrf.mxu0
    %v251 = vadd.f32 %v97, %v250
    %252 = vmatmul.bf16.gmra.mxu0 %v136
    %v253 = vpop.f32.mrf.mxu0
    %v254 = vadd.f32 %v97, %v253
    %v255 = vpop.f32.mrf.mxu0
    %v256 = vadd.f32 %v97, %v255
    %257 = vmatmul.bf16.gmra.mxu0 %v137
    %v258 = vpop.f32.mrf.mxu0
    %v259 = vadd.f32 %v97, %v258
    %v260 = vpop.f32.mrf.mxu0
    %v261 = vadd.f32 %v97, %v260
    %262 = vmatmul.bf16.gmra.mxu0 %v138
    %v263 = vpop.f32.mrf.mxu0
    %v264 = vadd.f32 %v97, %v263
    %v265 = vpop.f32.mrf.mxu0
    %v266 = vadd.f32 %v97, %v265
    %267 = vmatmul.bf16.gmra.mxu0 %v139
    %v268 = vpop.f32.mrf.mxu0
    %v269 = vadd.f32 %v97, %v268
    %v270 = vpop.f32.mrf.mxu0
    %v271 = vadd.f32 %v97, %v270
    %272 = vmatmul.bf16.gmra.mxu0 %v140
    %v273 = vpop.f32.mrf.mxu0
    %v274 = vadd.f32 %v97, %v273
    %v275 = vpop.f32.mrf.mxu0
    %v276 = vadd.f32 %v97, %v275
    %277 = vdwg.mxu0
    %278 = vmatpush.bf16.msra.mxu0 %v212
    %279 = vmatpush.bf16.msra.mxu0 %v210
    %280 = vmatpush.bf16.msra.mxu0 %v208
    %281 = vmatpush.bf16.msra.mxu0 %v206
    %282 = vmatpush.bf16.msra.mxu0 %v204
    %283 = vmatpush.bf16.msra.mxu0 %v202
    %284 = vmatpush.bf16.msra.mxu0 %v200
    %285 = vmatpush.bf16.msra.mxu0 %v198
    %286 = vmatmul.bf16.gmra.mxu0 %v133
    %v287 = vpop.f32.mrf.mxu0
    %v288 = vadd.f32 %v98, %v287
    %v289 = vpop.f32.mrf.mxu0
    %v290 = vadd.f32 %v98, %v289
    %291 = vmatmul.bf16.gmra.mxu0 %v134
    %v292 = vpop.f32.mrf.mxu0
    %v293 = vadd.f32 %v98, %v292
    %v294 = vpop.f32.mrf.mxu0
    %v295 = vadd.f32 %v98, %v294
    %296 = vmatmul.bf16.gmra.mxu0 %v135
    %v297 = vpop.f32.mrf.mxu0
    %v298 = vadd.f32 %v98, %v297
    %v299 = vpop.f32.mrf.mxu0
    %v300 = vadd.f32 %v98, %v299
    %301 = vmatmul.bf16.gmra.mxu0 %v136
    %v302 = vpop.f32.mrf.mxu0
    %v303 = vadd.f32 %v98, %v302
    %v304 = vpop.f32.mrf.mxu0
    %v305 = vadd.f32 %v98, %v304
    %306 = vmatmul.bf16.gmra.mxu0 %v137
    %v307 = vpop.f32.mrf.mxu0
    %v308 = vadd.f32 %v98, %v307
    %v309 = vpop.f32.mrf.mxu0
    %v310 = vadd.f32 %v98, %v309
    %311 = vmatmul.bf16.gmra.mxu0 %v138
    %v312 = vpop.f32.mrf.mxu0
    %v313 = vadd.f32 %v98, %v312
    %v314 = vpop.f32.mrf.mxu0
    %v315 = vadd.f32 %v98, %v314
    %316 = vmatmul.bf16.gmra.mxu0 %v139
    %v317 = vpop.f32.mrf.mxu0
    %v318 = vadd.f32 %v98, %v317
    %v319 = vpop.f32.mrf.mxu0
    %v320 = vadd.f32 %v98, %v319
    %321 = vmatmul.bf16.gmra.mxu0 %v140
    %v322 = vpop.f32.mrf.mxu0
    %v323 = vadd.f32 %v98, %v322
    %v324 = vpop.f32.mrf.mxu0
    %v325 = vadd.f32 %v98, %v324
    %326 = vdwg.mxu0
    %v327 = vpack.c.bf16 %v239, %v239
    %v328 = vpack.c.bf16 %v241, %v241
    %v329 = vpack.c.bf16 %v244, %v244
    %v330 = vpack.c.bf16 %v246, %v246
    %v331 = vpack.c.bf16 %v249, %v249
    %v332 = vpack.c.bf16 %v251, %v251
    %v333 = vpack.c.bf16 %v254, %v254
    %v334 = vpack.c.bf16 %v256, %v256
    %v335 = vpack.c.bf16 %v259, %v259
    %v336 = vpack.c.bf16 %v261, %v261
    %v337 = vpack.c.bf16 %v264, %v264
    %v338 = vpack.c.bf16 %v266, %v266
    %v339 = vpack.c.bf16 %v269, %v269
    %v340 = vpack.c.bf16 %v271, %v271
    %v341 = vpack.c.bf16 %v274, %v274
    %v342 = vpack.c.bf16 %v276, %v276
    %343 = vst [vmem:[#allocation8] sm:$0xf] %v327
    %344 = vst [vmem:[#allocation8 + $0x4] sm:$0xf] %v328
    %345 = vst [vmem:[#allocation8 + $0x8] sm:$0xf] %v329
    %346 = vst [vmem:[#allocation8 + $0xc] sm:$0xf] %v330
    %347 = vst [vmem:[#allocation8 + $0x10] sm:$0xf] %v331
    %348 = vst [vmem:[#allocation8 + $0x14] sm:$0xf] %v332
    %349 = vst [vmem:[#allocation8 + $0x18] sm:$0xf] %v333
    %350 = vst [vmem:[#allocation8 + $0x1c] sm:$0xf] %v334
    %351 = vst [vmem:[#allocation8 + $0x20] sm:$0xf] %v335
    %352 = vst [vmem:[#allocation8 + $0x24] sm:$0xf] %v336
    %353 = vst [vmem:[#allocation8 + $0x28] sm:$0xf] %v337
    %354 = vst [vmem:[#allocation8 + $0x2c] sm:$0xf] %v338
    %355 = vst [vmem:[#allocation8 + $0x30] sm:$0xf] %v339
    %356 = vst [vmem:[#allocation8 + $0x34] sm:$0xf] %v340
    %357 = vst [vmem:[#allocation8 + $0x38] sm:$0xf] %v341
    %358 = vst [vmem:[#allocation8 + $0x3c] sm:$0xf] %v342
    %v359 = vpack.c.bf16 %v288, %v288
    %v360 = vpack.c.bf16 %v290, %v290
    %v361 = vpack.c.bf16 %v293, %v293
    %v362 = vpack.c.bf16 %v295, %v295
    %v363 = vpack.c.bf16 %v298, %v298
    %v364 = vpack.c.bf16 %v300, %v300
    %v365 = vpack.c.bf16 %v303, %v303
    %v366 = vpack.c.bf16 %v305, %v305
    %v367 = vpack.c.bf16 %v308, %v308
    %v368 = vpack.c.bf16 %v310, %v310
    %v369 = vpack.c.bf16 %v313, %v313
    %v370 = vpack.c.bf16 %v315, %v315
    %v371 = vpack.c.bf16 %v318, %v318
    %v372 = vpack.c.bf16 %v320, %v320
    %v373 = vpack.c.bf16 %v323, %v323
    %v374 = vpack.c.bf16 %v325, %v325
    %375 = vst [vmem:[#allocation9] sm:$0xf] %v359
    %376 = vst [vmem:[#allocation9 + $0x4] sm:$0xf] %v360
    %377 = vst [vmem:[#allocation9 + $0x8] sm:$0xf] %v361
    %378 = vst [vmem:[#allocation9 + $0xc] sm:$0xf] %v362
    %379 = vst [vmem:[#allocation9 + $0x10] sm:$0xf] %v363
    %380 = vst [vmem:[#allocation9 + $0x14] sm:$0xf] %v364
    %381 = vst [vmem:[#allocation9 + $0x18] sm:$0xf] %v365
    %382 = vst [vmem:[#allocation9 + $0x1c] sm:$0xf] %v366
    %383 = vst [vmem:[#allocation9 + $0x20] sm:$0xf] %v367
    %384 = vst [vmem:[#allocation9 + $0x24] sm:$0xf] %v368
    %385 = vst [vmem:[#allocation9 + $0x28] sm:$0xf] %v369
    %386 = vst [vmem:[#allocation9 + $0x2c] sm:$0xf] %v370
    %387 = vst [vmem:[#allocation9 + $0x30] sm:$0xf] %v371
    %388 = vst [vmem:[#allocation9 + $0x34] sm:$0xf] %v372
    %389 = vst [vmem:[#allocation9 + $0x38] sm:$0xf] %v373
    %390 = vst [vmem:[#allocation9 + $0x3c] sm:$0xf] %v374
    // Predicated region
    $region26: #{tpu_custom_call.1} parent=1 // pred_check
      _
    $region27: #{tpu_custom_call.1} parent=1 // pred_check_branch
      %392 = sbr.rel (0) target = $region29
    $region28: #{tpu_custom_call.1} parent=1 // pred_region
      %394 = vsyncadd [#allocation4], 0
      %s395 = sshll.u32 [#allocation8], 4
      %s396 = int_to_ptr.vmem [resolvable:$true] %s395
      %s397 = sshll.u32 %s3, 4
      %s398 = int_to_ptr.hbm [resolvable:$true] %s397
      %403 = dma.vmem_to_hbm [thread:$0]  %s396, 1024, %s398, [#allocation4], 64, 64, 4
    $region29: #{tpu_custom_call.1} parent=1 // pred_fallthru
      _
    // Predicated region
    $region30: #{tpu_custom_call.1} parent=1 // pred_check
      _
    $region31: #{tpu_custom_call.1} parent=1 // pred_check_branch
      %405 = sbr.rel (0) target = $region33
    $region32: #{tpu_custom_call.1} parent=1 // pred_region
      %407 = vsyncadd [#allocation10], 0
      %s408 = sshll.u32 [#allocation9], 4
      %s409 = int_to_ptr.vmem [resolvable:$true] %s408
      %s410 = sshll.u32 %s4, 4
      %s411 = int_to_ptr.hbm [resolvable:$true] %s410
      %416 = dma.vmem_to_hbm [thread:$0]  %s409, 1024, %s411, [#allocation10], 64, 64, 4
    $region33: #{tpu_custom_call.1} parent=1 // pred_fallthru
      _
    // Predicated region
    $region34: #{tpu_custom_call.1} parent=1 // pred_check
      _
    $region35: #{tpu_custom_call.1} parent=1 // pred_check_branch
      %418 = sbr.rel (0) target = $region37
    $region36: #{tpu_custom_call.1} parent=1 // pred_region
      %420 = dma.done [#allocation4], 1024
    $region37: #{tpu_custom_call.1} parent=1 // pred_fallthru
      _
    // Predicated region
    $region38: #{tpu_custom_call.1} parent=1 // pred_check
      _
    $region39: #{tpu_custom_call.1} parent=1 // pred_check_branch
      %422 = sbr.rel (0) target = $region41
    $region40: #{tpu_custom_call.1} parent=1 // pred_region
      %424 = dma.done [#allocation10], 1024
    $region41: #{tpu_custom_call.1} parent=1 // pred_fallthru
      _
    %425 = vsyncpa [#allocation3], 1
    %426 = vsyncpa [#allocation6], 1
    %427 = vsyncpa [#allocation4], 1
    %428 = vsyncpa [#allocation10], 1

</llo_original>
